<compile_context>
chip_gen: v7x
topology: tpu7x:2x2x1
jax: 0.10.0
libtpu: 0.0.40
codegen_flags: <defaults>
</compile_context>

<pallas_src>
import functools

import jax
import jax.numpy as jnp
from jax.experimental import pallas as pl
from jax.experimental.pallas import tpu as pltpu

LANE = 128           # TPU lane width
MAX_TILE_B = 1024    # upper bound on batch tile (multiple of 8)
NEG_BIG = -1e30      # "minus infinity" bias for padded output lanes (f32 path)


def _round_up(x, m):
    return (x + m - 1) // m * m


def _choose_tile_b(batch, in_size, out_p,
                   max_tile=MAX_TILE_B, vmem_budget=12 * 1024 * 1024):
    """Pick a batch tile that (a) keeps double-buffered x/out streams within a
    conservative VMEM budget, (b) gives a grid of >= 2 blocks when the batch
    allows it (v7x megacore sharding + DMA/compute overlap), and (c) bounds the
    batch padding waste to <= 8 rows per tile."""
    batch8 = _round_up(max(batch, 1), 8)
    # bf16 x stream + f32 out stream, each double-buffered by the pipeline.
    bytes_per_row = 2 * (in_size * 2 + out_p * 4)
    cap = max(8, (vmem_budget // bytes_per_row) // 8 * 8)
    max_tile = min(max_tile, cap)
    n_tiles = pl.cdiv(batch8, max_tile)
    if batch8 >= 16:
        n_tiles = max(n_tiles, 2)          # keep both v7x TensorCores busy
    tile_b = _round_up(pl.cdiv(batch8, n_tiles), 8)
    return tile_b, n_tiles * tile_b


def _mlp_softmax_kernel(x_ref, w1_ref, b1_ref, w2_ref, b2_ref, o_ref):
    # First linear + ReLU: bf16 x bf16 MXU matmul with f32 accumulation.
    h = jnp.dot(x_ref[...], w1_ref[...], preferred_element_type=jnp.float32)
    h = jnp.maximum(h + b1_ref[...], 0.0)

    # Second linear. Padded output lanes get bias = -1e30 -> softmax weight 0.
    logits = jnp.dot(h.astype(w2_ref.dtype), w2_ref[...],
                     preferred_element_type=jnp.float32)
    logits = logits + b2_ref[...]

    # Numerically-stable softmax along dim=1 (the feature axis).
    # Exact division: kernel is HBM-bound, the VPU/EUP cost is fully hidden,
    # and rows sum to 1 exactly in f32.
    m = jnp.max(logits, axis=1, keepdims=True)
    e = jnp.exp(logits - m)
    denom = jnp.sum(e, axis=1, keepdims=True)
    o_ref[...] = (e / denom).astype(o_ref.dtype)


def prepare_params(w1, b1, w2, b2):
    """One-time parameter prep (hoisted out of the per-call forward path):
    pad hidden -> 128 lanes, pad output lanes -> 128 with -1e30 bias, and cast
    the weight matrices to bf16 for the MXU / HBM stream."""
    in_size, hidden = w1.shape
    out_size = w2.shape[1]
    hidden_p = _round_up(hidden, LANE)
    out_p = _round_up(out_size, LANE)

    w1_p = jnp.pad(w1, ((0, 0), (0, hidden_p - hidden))).astype(jnp.bfloat16)
    b1_p = jnp.pad(b1, ((0, 0), (0, hidden_p - hidden))).astype(jnp.float32)
    w2_p = jnp.pad(w2, ((0, hidden_p - hidden),
                        (0, out_p - out_size))).astype(jnp.bfloat16)
    b2_p = jnp.pad(b2, ((0, 0), (0, out_p - out_size)),
                   constant_values=NEG_BIG).astype(jnp.float32)
    return (w1_p, b1_p, w2_p, b2_p), out_size


@functools.partial(jax.jit, static_argnames=("out_size",))
def linear_model_forward(x, w1_p, b1_p, w2_p, b2_p, *, out_size):
    """x: (B, input_size) f32; padded params from prepare_params -> (B, out_size) f32."""
    batch, in_size = x.shape
    hidden_p = w1_p.shape[1]
    out_p = w2_p.shape[1]

    # --- batch tiling (bounded padding, >=2 blocks when possible) -----------
    tile_b, batch_p = _choose_tile_b(batch, in_size, out_p)
    grid = (batch_p // tile_b,)

    # bf16 HBM stream for x (the dominant read); pad only when needed.
    x_p = x.astype(jnp.bfloat16)
    if batch_p != batch:
        x_p = jnp.pad(x_p, ((0, batch_p - batch), (0, 0)))

    # --- explicit scoped-VMEM limit with headroom ----------------------------
    vmem_est = (
        2 * tile_b * in_size * 2          # x double-buffer (bf16)
        + 2 * tile_b * out_p * 4          # out double-buffer (f32)
        + in_size * hidden_p * 2 + hidden_p * 4    # w1 + b1 (single buffer)
        + hidden_p * out_p * 2 + out_p * 4         # w2 + b2 (single buffer)
        + tile_b * (hidden_p + out_p) * 4          # in-kernel intermediates
    )
    vmem_limit = int(min(32 * 1024 * 1024, max(4 * 1024 * 1024, 2 * vmem_est)))

    resident = pl.Buffered(1)   # constant-index weights: one pipeline buffer

    out_padded = pl.pallas_call(
        _mlp_softmax_kernel,
        out_shape=jax.ShapeDtypeStruct((batch_p, out_p), jnp.float32),
        grid_spec=pltpu.PrefetchScalarGridSpec(
            num_scalar_prefetch=0,
            grid=grid,
            in_specs=[
                # x: tiled over the batch axis (double-buffered by Pallas).
                pl.BlockSpec((tile_b, in_size), lambda i: (i, 0)),
                # Weights / biases: same block every grid step -> VMEM-resident.
                pl.BlockSpec((in_size, hidden_p), lambda i: (0, 0),
                             pipeline_mode=resident),
                pl.BlockSpec((1, hidden_p), lambda i: (0, 0),
                             pipeline_mode=resident),
                pl.BlockSpec((hidden_p, out_p), lambda i: (0, 0),
                             pipeline_mode=resident),
                pl.BlockSpec((1, out_p), lambda i: (0, 0),
                             pipeline_mode=resident),
            ],
            out_specs=pl.BlockSpec((tile_b, out_p), lambda i: (i, 0)),
        ),
        compiler_params=pltpu.CompilerParams(
            dimension_semantics=("parallel",),   # megacore sharding on v7x
            vmem_limit_bytes=vmem_limit,
        ),
    )(x_p, w1_p, b1_p, w2_p, b2_p)

    return out_padded[:batch, :out_size]


def init_linear_params(key, in_features, out_features):
    """Deterministic PyTorch-style init: U(-1/sqrt(in), 1/sqrt(in)).
    Returns W with shape (in_features, out_features) (transposed vs torch)."""
    k_w, k_b = jax.random.split(key)
    bound = 1.0 / (in_features ** 0.5)
    w = jax.random.uniform(
        k_w, (in_features, out_features), jnp.float32, -bound, bound)
    b = jax.random.uniform(
        k_b, (1, out_features), jnp.float32, -bound, bound)
    return w, b


if __name__ == "__main__":
    # Small shapes consistent with the module: batch=8, input_size=32, output_size=10.
    batch = 8
    input_size = 32
    hidden = 100
    output_size = 10

    root = jax.random.PRNGKey(0)
    k_x, k_l1, k_l2 = jax.random.split(root, 3)

    x = jax.random.normal(k_x, (batch, input_size), jnp.float32)
    w1, b1 = init_linear_params(k_l1, input_size, hidden)
    w2, b2 = init_linear_params(k_l2, hidden, output_size)

    # One-time param prep (pad + bf16 cast), then the forward pass.
    (w1_p, b1_p, w2_p, b2_p), out_sz = prepare_params(w1, b1, w2, b2)
    out = linear_model_forward(x, w1_p, b1_p, w2_p, b2_p, out_size=out_sz)
    out = jax.block_until_ready(out)

    # Reference 1: pure-JAX forward with the SAME bf16 quantization as the
    # kernel's MXU inputs (tight tolerance).
    xb = x.astype(jnp.bfloat16)
    w1b = w1.astype(jnp.bfloat16)
    w2b = w2.astype(jnp.bfloat16)
    h_ref = jnp.maximum(
        jnp.dot(xb, w1b, preferred_element_type=jnp.float32) + b1, 0.0)
    logits_ref = jnp.dot(h_ref.astype(jnp.bfloat16), w2b,
                         preferred_element_type=jnp.float32) + b2
    ref = jax.nn.softmax(logits_ref, axis=1)

    # Reference 2: full-f32 forward (sanity check on the bf16 input quantization).
    ref32 = jax.nn.softmax(jnp.maximum(x @ w1 + b1, 0.0) @ w2 + b2, axis=1)

    assert out.shape == (batch, output_size)
    assert jnp.allclose(out, ref, atol=2e-3, rtol=2e-3)
    assert jnp.allclose(out, ref32, atol=3e-2)
    # Exact in-kernel division -> rows sum to 1 (f32 exact).
    assert jnp.allclose(jnp.sum(out, axis=1), 1.0, atol=1e-5)

    print("KERNEL_OK")
</pallas_src>

<mosaic_0001>
module attributes {stable_mosaic.version = 11 : i64} {
  func.func @_mlp_softmax_kernel(%arg0: i32, %arg1: memref<8x32xbf16, #tpu.memory_space<vmem>>, %arg2: memref<32x128xbf16, #tpu.memory_space<vmem>>, %arg3: memref<1x128xf32, #tpu.memory_space<vmem>>, %arg4: memref<128x128xbf16, #tpu.memory_space<vmem>>, %arg5: memref<1x128xf32, #tpu.memory_space<vmem>>, %arg6: memref<8x128xf32, #tpu.memory_space<vmem>>) attributes {dimension_semantics = [#tpu.dimension_semantics<parallel>], iteration_bounds = array<i64: 1>, scalar_prefetch = 0 : i64, scratch_operands = 0 : i64, tpu.core_type = #tpu.core_type<tc>, window_params = [{transform_indices = @transform_0, window_bounds = array<i64: 8, 32>}, {pipeline_mode = #tpu.pipeline_mode<synchronous>, transform_indices = @transform_1, window_bounds = array<i64: 32, 128>}, {pipeline_mode = #tpu.pipeline_mode<synchronous>, transform_indices = @transform_2, window_bounds = array<i64: 1, 128>}, {pipeline_mode = #tpu.pipeline_mode<synchronous>, transform_indices = @transform_3, window_bounds = array<i64: 128, 128>}, {pipeline_mode = #tpu.pipeline_mode<synchronous>, transform_indices = @transform_4, window_bounds = array<i64: 1, 128>}, {transform_indices = @transform_5, window_bounds = array<i64: 8, 128>}]} {
    %c0 = arith.constant 0 : index
    %c0_0 = arith.constant 0 : index
    %0 = vector.load %arg1[%c0, %c0_0] : memref<8x32xbf16, #tpu.memory_space<vmem>>, vector<8x32xbf16>
    %c0_1 = arith.constant 0 : index
    %c0_2 = arith.constant 0 : index
    %1 = vector.load %arg2[%c0_1, %c0_2] : memref<32x128xbf16, #tpu.memory_space<vmem>>, vector<32x128xbf16>
    %cst = arith.constant dense<0.000000e+00> : vector<8x128xf32>
    %2 = tpu.matmul %0, %1, %cst {dimension_numbers = #tpu.dot_dimension_numbers<[1], [0], [0], [1], [0, 0, 1, 1], [], []>} : vector<8x32xbf16>, vector<32x128xbf16>, vector<8x128xf32> -> vector<8x128xf32>
    %c0_3 = arith.constant 0 : index
    %c0_4 = arith.constant 0 : index
    %3 = vector.load %arg3[%c0_3, %c0_4] : memref<1x128xf32, #tpu.memory_space<vmem>>, vector<1x128xf32>
    %4 = vector.broadcast %3 : vector<1x128xf32> to vector<8x128xf32>
    %5 = arith.addf %2, %4 : vector<8x128xf32>
    %cst_5 = arith.constant 0.000000e+00 : f32
    %6 = vector.broadcast %cst_5 : f32 to vector<8x128xf32>
    %7 = arith.maximumf %5, %6 : vector<8x128xf32>
    %8 = arith.truncf %7 : vector<8x128xf32> to vector<8x128xbf16>
    %c0_6 = arith.constant 0 : index
    %c0_7 = arith.constant 0 : index
    %9 = vector.load %arg4[%c0_6, %c0_7] : memref<128x128xbf16, #tpu.memory_space<vmem>>, vector<128x128xbf16>
    %cst_8 = arith.constant dense<0.000000e+00> : vector<8x128xf32>
    %10 = tpu.matmul %8, %9, %cst_8 {dimension_numbers = #tpu.dot_dimension_numbers<[1], [0], [0], [1], [0, 0, 1, 1], [], []>} : vector<8x128xbf16>, vector<128x128xbf16>, vector<8x128xf32> -> vector<8x128xf32>
    %c0_9 = arith.constant 0 : index
    %c0_10 = arith.constant 0 : index
    %11 = vector.load %arg5[%c0_9, %c0_10] : memref<1x128xf32, #tpu.memory_space<vmem>>, vector<1x128xf32>
    %12 = vector.broadcast %11 : vector<1x128xf32> to vector<8x128xf32>
    %13 = arith.addf %10, %12 : vector<8x128xf32>
    %cst_11 = arith.constant dense<0xFF800000> : vector<8xf32>
    %14 = vector.multi_reduction <maximumf>, %13, %cst_11 [1] : vector<8x128xf32> to vector<8xf32>
    %15 = vector.shape_cast %14 : vector<8xf32> to vector<8x1xf32>
    %16 = vector.broadcast %15 : vector<8x1xf32> to vector<8x128xf32>
    %17 = arith.subf %13, %16 : vector<8x128xf32>
    %18 = math.exp %17 : vector<8x128xf32>
    %cst_12 = arith.constant dense<0.000000e+00> : vector<8xf32>
    %19 = vector.multi_reduction <add>, %18, %cst_12 [1] : vector<8x128xf32> to vector<8xf32>
    %20 = vector.shape_cast %19 : vector<8xf32> to vector<8x1xf32>
    %21 = vector.broadcast %20 : vector<8x1xf32> to vector<8x128xf32>
    %22 = arith.divf %18, %21 : vector<8x128xf32>
    %c0_13 = arith.constant 0 : index
    %c0_14 = arith.constant 0 : index
    %23 = vector.load %arg6[%c0_13, %c0_14] : memref<8x128xf32, #tpu.memory_space<vmem>>, vector<8x128xf32>
    tpu.vector_store %arg6[%c0_13, %c0_14], %22 {strides = array<i32>} : memref<8x128xf32, #tpu.memory_space<vmem>>, vector<8x128xf32>,
    return
  }
  func.func @transform_0(%arg0: i32) -> (i32, i32) {
    %c0_i32 = arith.constant 0 : i32
    %c0_i32_0 = arith.constant 0 : i32
    return %arg0, %c0_i32 : i32, i32
  }
  func.func @transform_1(%arg0: i32) -> (i32, i32) {
    %c0_i32 = arith.constant 0 : i32
    %c0_i32_0 = arith.constant 0 : i32
    %c0_i32_1 = arith.constant 0 : i32
    return %c0_i32, %c0_i32_0 : i32, i32
  }
  func.func @transform_2(%arg0: i32) -> (i32, i32) {
    %c0_i32 = arith.constant 0 : i32
    %c0_i32_0 = arith.constant 0 : i32
    %c0_i32_1 = arith.constant 0 : i32
    return %c0_i32, %c0_i32_0 : i32, i32
  }
  func.func @transform_3(%arg0: i32) -> (i32, i32) {
    %c0_i32 = arith.constant 0 : i32
    %c0_i32_0 = arith.constant 0 : i32
    %c0_i32_1 = arith.constant 0 : i32
    return %c0_i32, %c0_i32_0 : i32, i32
  }
  func.func @transform_4(%arg0: i32) -> (i32, i32) {
    %c0_i32 = arith.constant 0 : i32
    %c0_i32_0 = arith.constant 0 : i32
    %c0_i32_1 = arith.constant 0 : i32
    return %c0_i32, %c0_i32_0 : i32, i32
  }
  func.func @transform_5(%arg0: i32) -> (i32, i32) {
    %c0_i32 = arith.constant 0 : i32
    %c0_i32_0 = arith.constant 0 : i32
    return %arg0, %c0_i32 : i32, i32
  }
}

</mosaic_0001>

<llo_original>
// kernel: linear_model_forward.1
$region0: #{linear_model_forward.1}
  #allocation0 [shape = 'u32[]', space=smem, size = 0x4, offset = 0x4, fixed_abs, tag = 'smem constant byte address 0x4 - core index']
  #allocation1 [shape = 'u32[144,128]{1,0:T(1,128)}', space=vmem, size = 0x12000, scoped, tag = 'internal scratch']
  %s0 = inlined_call_operand.vmem [shape: bf16[8,32], index: 0, kind: input, shape index: {}]
  %s1 = inlined_call_operand.hbm [shape: bf16[32,128], index: 1, kind: input, shape index: {}]
  %s2 = inlined_call_operand.vmem [shape: f32[1,128], index: 2, kind: input, shape index: {}]
  %s3 = inlined_call_operand.hbm [shape: bf16[128,128], index: 3, kind: input, shape index: {}]
  %s4 = inlined_call_operand.vmem [shape: f32[1,128], index: 4, kind: input, shape index: {}]
  %s5 = inlined_call_operand.hbm [shape: f32[8,128], index: 5, kind: output, shape index: {}]
  %s6 = sld [smem:[#allocation0]]
  $region38: #{linear_model_forward.1} parent=0
    _
  %s8 = ssub.s32 1, %s6
  %s9 = scalar_select 0, %s8, %s6
  $region1: #{linear_model_forward.1} parent=0
    #allocation2 [shape = 'u8[8192]{0}', space=vmem, size = 0x2000, scoped, tag = 'input window, operand 1, single buffered']
    #allocation3 [shape = 's32[1]{0}', space=sflag, size = 0x4, scoped, tag = 'scoped memory for linear_model_forward.1']
    #allocation4 [shape = 's32[1]{0}', space=sflag, size = 0x4, scoped, tag = 'scoped memory for linear_model_forward.1']
    #allocation5 [shape = 'u8[32768]{0}', space=vmem, size = 0x8000, scoped, tag = 'input window, operand 3, single buffered']
    #allocation6 [shape = 's32[1]{0}', space=sflag, size = 0x4, scoped, tag = 'scoped memory for linear_model_forward.1']
    #allocation7 [shape = 'u8[4096]{0}', space=vmem, size = 0x1000, scoped, tag = 'output window, operand 0, single buffered']
    %10 = vsyncpa [#allocation3], 0
    %11 = vsyncpa [#allocation6], 0
    %12 = vsyncpa [#allocation4], 0
    // Predicated region
    $region2: #{linear_model_forward.1} parent=1 // pred_check
      _
    $region3: #{linear_model_forward.1} parent=1 // pred_check_branch
      %14 = sbr.rel (0) target = $region5
    $region4: #{linear_model_forward.1} parent=1 // pred_region
      _
    $region5: #{linear_model_forward.1} parent=1 // pred_fallthru
      _
    // Predicated region
    $region6: #{linear_model_forward.1} parent=1 // pred_check
      _
    $region7: #{linear_model_forward.1} parent=1 // pred_check_branch
      %16 = sbr.rel (0) target = $region9
    $region8: #{linear_model_forward.1} parent=1 // pred_region
      %s18 = ssub.s32 256, 256
      %19 = vsyncadd [#allocation3], %s18
      %s20 = sshll.u32 [#allocation2], 4
      %s21 = int_to_ptr.vmem [resolvable:$true] %s20
      %26 = dma.hbm_to_vmem [thread:$0]  %s1, 256, %s21, [#allocation3], 64, 64, 4
    $region9: #{linear_model_forward.1} parent=1 // pred_fallthru
      _
    // Predicated region
    $region10: #{linear_model_forward.1} parent=1 // pred_check
      _
    $region11: #{linear_model_forward.1} parent=1 // pred_check_branch
      %28 = sbr.rel (0) target = $region13
    $region12: #{linear_model_forward.1} parent=1 // pred_region
      _
    $region13: #{linear_model_forward.1} parent=1 // pred_fallthru
      _
    // Predicated region
    $region14: #{linear_model_forward.1} parent=1 // pred_check
      _
    $region15: #{linear_model_forward.1} parent=1 // pred_check_branch
      %30 = sbr.rel (0) target = $region17
    $region16: #{linear_model_forward.1} parent=1 // pred_region
      %s32 = ssub.s32 1024, 1024
      %33 = vsyncadd [#allocation6], %s32
      %s34 = sshll.u32 [#allocation5], 4
      %s35 = int_to_ptr.vmem [resolvable:$true] %s34
      %40 = dma.hbm_to_vmem [thread:$0]  %s3, 1024, %s35, [#allocation6], 64, 64, 4
    $region17: #{linear_model_forward.1} parent=1 // pred_fallthru
      _
    // Predicated region
    $region18: #{linear_model_forward.1} parent=1 // pred_check
      _
    $region19: #{linear_model_forward.1} parent=1 // pred_check_branch
      %42 = sbr.rel (0) target = $region21
    $region20: #{linear_model_forward.1} parent=1 // pred_region
      _
    $region21: #{linear_model_forward.1} parent=1 // pred_fallthru
      _
    // Predicated region
    $region22: #{linear_model_forward.1} parent=1 // pred_check
      _
    $region23: #{linear_model_forward.1} parent=1 // pred_check_branch
      %44 = sbr.rel (0) target = $region25
    $region24: #{linear_model_forward.1} parent=1 // pred_region
      %45 = dma.done [#allocation3], 256
    $region25: #{linear_model_forward.1} parent=1 // pred_fallthru
      _
    // Predicated region
    $region26: #{linear_model_forward.1} parent=1 // pred_check
      _
    $region27: #{linear_model_forward.1} parent=1 // pred_check_branch
      %47 = sbr.rel (0) target = $region29
    $region28: #{linear_model_forward.1} parent=1 // pred_region
      %48 = dma.done [#allocation6], 1024
    $region29: #{linear_model_forward.1} parent=1 // pred_fallthru
      _
    %v50 = vld [vmem:[%s0] sm:$0xf]
    %v51 = vld [vmem:[#allocation2] sm:$0xf]
    %v52 = vld [vmem:[#allocation2 + $0x4] sm:$0xf]
    %v53 = vld [vmem:[#allocation2 + $0x8] sm:$0xf]
    %v54 = vld [vmem:[#allocation2 + $0xc] sm:$0xf]
    %v55 = vld [vmem:[%s2] sm:$0x1]
    %v57 = vlaneseq
    %v58 = vshrl.u32 %v57, 7
    %v59 = vsub.s32 0, %v58
    %v60 = vrot.slane %v55, %v59
    %v66 = vunpack.c.l.b16 %v51
    %v67 = vunpack.c.l.b16 %v52
    %v68 = vunpack.c.l.b16 %v53
    %v69 = vunpack.c.l.b16 %v54
    %v70 = vpack.c.b16 %v67, %v66
    %v71 = vpack.c.b16 %v69, %v68
    %vm74 = vcmask 261120
    %v76 = vsel %vm74, %v50, 0
    %78 = vmatprep.subr.bf16.mxu0 0
    %79 = vmatpush1.bf16.msra.mxu0 %v70
    %80 = vmatprep.subr.bf16.mxu0 0
    %81 = vmatpush1.bf16.msra.mxu0 %v71
    %82 = vmatprep.subr.bf16.mxu0 0
    %83 = vmatpush1.bf16.msra.mxu0 0
    %84 = vmatprep.subr.bf16.mxu0 0
    %85 = vmatpush1.bf16.msra.mxu0 0
    %86 = vmatprep.subr.bf16.mxu0 0
    %87 = vmatpush1.bf16.msra.mxu0 0
    %88 = vmatprep.subr.bf16.mxu0 0
    %89 = vmatpush1.bf16.msra.mxu0 0
    %90 = vmatprep.subr.bf16.mxu0 0
    %91 = vmatpush1.bf16.msra.mxu0 0
    %92 = vmatprep.subr.bf16.mxu0 0
    %93 = vmatpush1.bf16.msra.mxu0 0
    %94 = vmatprep.subr.bf16.mxu0 0
    %95 = vmatpush1.bf16.msra.mxu0 0
    %96 = vmatprep.subr.bf16.mxu0 0
    %97 = vmatpush1.bf16.msra.mxu0 0
    %98 = vmatprep.subr.bf16.mxu0 0
    %99 = vmatpush1.bf16.msra.mxu0 0
    %100 = vmatprep.subr.bf16.mxu0 0
    %101 = vmatpush1.bf16.msra.mxu0 0
    %102 = vmatprep.subr.bf16.mxu0 0
    %103 = vmatpush1.bf16.msra.mxu0 0
    %104 = vmatprep.subr.bf16.mxu0 0
    %105 = vmatpush1.bf16.msra.mxu0 0
    %106 = vmatprep.subr.bf16.mxu0 0
    %107 = vmatpush1.bf16.msra.mxu0 0
    %108 = vmatprep.subr.bf16.mxu0 0
    %109 = vmatpush1.bf16.msra.mxu0 0
    %110 = vmatprep.mubr.bf16.mxu0 0
    %111 = vmatmul.mubr.bf16.gmra.mrb[0].mxu0 %v76
    %v112 = vpop.f32.mrb[0].mxu0
    %v113 = vadd.f32 %v60, %v112
    %v114 = vpop.f32.mrb[0].mxu0
    %v115 = vpop.f32.mrb[0].mxu0
    %v116 = vpop.f32.mrb[0].mxu0
    %117 = vdwg.mxu0
    %v118 = vmax.f32 %v113, 0.0
    %v119 = vpack.c.bf16 %v118, %v118
    %v120 = vld [vmem:[#allocation5] sm:$0xf]
    %v121 = vld [vmem:[#allocation5 + $0x4] sm:$0xf]
    %v122 = vld [vmem:[#allocation5 + $0x8] sm:$0xf]
    %v123 = vld [vmem:[#allocation5 + $0xc] sm:$0xf]
    %v124 = vld [vmem:[#allocation5 + $0x10] sm:$0xf]
    %v125 = vld [vmem:[#allocation5 + $0x14] sm:$0xf]
    %v126 = vld [vmem:[#allocation5 + $0x18] sm:$0xf]
    %v127 = vld [vmem:[#allocation5 + $0x1c] sm:$0xf]
    %v128 = vld [vmem:[#allocation5 + $0x20] sm:$0xf]
    %v129 = vld [vmem:[#allocation5 + $0x24] sm:$0xf]
    %v130 = vld [vmem:[#allocation5 + $0x28] sm:$0xf]
    %v131 = vld [vmem:[#allocation5 + $0x2c] sm:$0xf]
    %v132 = vld [vmem:[#allocation5 + $0x30] sm:$0xf]
    %v133 = vld [vmem:[#allocation5 + $0x34] sm:$0xf]
    %v134 = vld [vmem:[#allocation5 + $0x38] sm:$0xf]
    %v135 = vld [vmem:[#allocation5 + $0x3c] sm:$0xf]
    %v136 = vld [vmem:[%s4] sm:$0x1]
    %v138 = vlaneseq
    %v139 = vshrl.u32 %v138, 7
    %v140 = vsub.s32 0, %v139
    %v141 = vrot.slane %v136, %v140
    %v159 = vunpack.c.l.b16 %v120
    %v160 = vunpack.c.l.b16 %v121
    %v161 = vunpack.c.l.b16 %v122
    %v162 = vunpack.c.l.b16 %v123
    %v163 = vunpack.c.l.b16 %v124
    %v164 = vunpack.c.l.b16 %v125
    %v165 = vunpack.c.l.b16 %v126
    %v166 = vunpack.c.l.b16 %v127
    %v167 = vunpack.c.l.b16 %v128
    %v168 = vunpack.c.l.b16 %v129
    %v169 = vunpack.c.l.b16 %v130
    %v170 = vunpack.c.l.b16 %v131
    %v171 = vunpack.c.l.b16 %v132
    %v172 = vunpack.c.l.b16 %v133
    %v173 = vunpack.c.l.b16 %v134
    %v174 = vunpack.c.l.b16 %v135
    %v175 = vpack.c.b16 %v160, %v159
    %v176 = vpack.c.b16 %v162, %v161
    %v177 = vpack.c.b16 %v164, %v163
    %v178 = vpack.c.b16 %v166, %v165
    %v179 = vpack.c.b16 %v168, %v167
    %v180 = vpack.c.b16 %v170, %v169
    %v181 = vpack.c.b16 %v172, %v171
    %v182 = vpack.c.b16 %v174, %v173
    %191 = vmatprep.subr.bf16.mxu0 0
    %192 = vmatpush1.bf16.msra.mxu0 %v175
    %193 = vmatprep.subr.bf16.mxu0 0
    %194 = vmatpush1.bf16.msra.mxu0 %v176
    %195 = vmatprep.subr.bf16.mxu0 0
    %196 = vmatpush1.bf16.msra.mxu0 %v177
    %197 = vmatprep.subr.bf16.mxu0 0
    %198 = vmatpush1.bf16.msra.mxu0 %v178
    %199 = vmatprep.subr.bf16.mxu0 0
    %200 = vmatpush1.bf16.msra.mxu0 %v179
    %201 = vmatprep.subr.bf16.mxu0 0
    %202 = vmatpush1.bf16.msra.mxu0 %v180
    %203 = vmatprep.subr.bf16.mxu0 0
    %204 = vmatpush1.bf16.msra.mxu0 %v181
    %205 = vmatprep.subr.bf16.mxu0 0
    %206 = vmatpush1.bf16.msra.mxu0 %v182
    %207 = vmatprep.subr.bf16.mxu0 0
    %208 = vmatpush1.bf16.msra.mxu0 0
    %209 = vmatprep.subr.bf16.mxu0 0
    %210 = vmatpush1.bf16.msra.mxu0 0
    %211 = vmatprep.subr.bf16.mxu0 0
    %212 = vmatpush1.bf16.msra.mxu0 0
    %213 = vmatprep.subr.bf16.mxu0 0
    %214 = vmatpush1.bf16.msra.mxu0 0
    %215 = vmatprep.subr.bf16.mxu0 0
    %216 = vmatpush1.bf16.msra.mxu0 0
    %217 = vmatprep.subr.bf16.mxu0 0
    %218 = vmatpush1.bf16.msra.mxu0 0
    %219 = vmatprep.subr.bf16.mxu0 0
    %220 = vmatpush1.bf16.msra.mxu0 0
    %221 = vmatprep.subr.bf16.mxu0 0
    %222 = vmatpush1.bf16.msra.mxu0 0
    %223 = vmatprep.mubr.bf16.mxu0 0
    %224 = vmatmul.mubr.bf16.gmra.mrb[0].mxu0 %v119
    %v225 = vpop.f32.mrb[0].mxu0
    %v226 = vadd.f32 %v141, %v225
    %v227 = vpop.f32.mrb[0].mxu0
    %v228 = vpop.f32.mrb[0].mxu0
    %v229 = vpop.f32.mrb[0].mxu0
    %230 = vdwg.mxu0
    %231 = vmax.xlane.f32.xlu0 %v226
    %v232 = vpop.xlane.xlu0 %231
    %v233 = vsub.f32 %v226, %v232
    %v234 = vmul.f32 %v233, 1.442695
    %v235 = vpow.pop %v234
    %236 = vadd.xlane.f32.xlu0 %v235
    %v237 = vpop.xlane.xlu0 %236
    %v238 = vrcp.pop %v237
    %v239 = vmul.f32 %v235, %v238
    %240 = vst [vmem:[#allocation7] sm:$0xff] %v239
    // Predicated region
    $region30: #{linear_model_forward.1} parent=1 // pred_check
      _
    $region31: #{linear_model_forward.1} parent=1 // pred_check_branch
      %242 = sbr.rel (0) target = $region33
    $region32: #{linear_model_forward.1} parent=1 // pred_region
      %s244 = ssub.s32 128, 128
      %245 = vsyncadd [#allocation4], %s244
      %s247 = sshll.u32 [#allocation7], 4
      %s248 = int_to_ptr.vmem [resolvable:$true] %s247
      %250 = dma.vmem_to_hbm [thread:$0]  %s248, 128, %s5, [#allocation4]
    $region33: #{linear_model_forward.1} parent=1 // pred_fallthru
      _
    // Predicated region
    $region34: #{linear_model_forward.1} parent=1 // pred_check
      _
    $region35: #{linear_model_forward.1} parent=1 // pred_check_branch
      %252 = sbr.rel (0) target = $region37
    $region36: #{linear_model_forward.1} parent=1 // pred_region
      %253 = dma.done [#allocation4], 128
    $region37: #{linear_model_forward.1} parent=1 // pred_fallthru
      _
    %254 = vsyncpa [#allocation3], 1
    %255 = vsyncpa [#allocation6], 1
    %256 = vsyncpa [#allocation4], 1

</llo_original>
